<compile_context>
chip_gen: v6e
topology: v6e:2x2x1
jax: 0.10.0
libtpu: 0.0.40
codegen_flags: <defaults>
</compile_context>

<pallas_src>
from math import gcd

import jax
import jax.numpy as jnp
from jax import lax
from jax.experimental import pallas as pl
from jax.experimental.pallas import tpu as pltpu

EPS = 1e-5  # nn.GroupNorm default


def _round_up(x, m):
    return (x + m - 1) // m * m


def _linear_gn_relu_kernel(x_ref, wt_ref, beta_ref, gavg_ref, gbc_ref,
                           gbcg_ref, o_ref):
    # x_ref:    (tm, n_in_p)
    # wt_ref:   (n_in_p, n_out_p)    W^T, zero padded
    # beta_ref: (1, n_out_p)         GroupNorm bias (zero padded)
    # gavg_ref: (n_out_p, G_p)       1/group_size where channel c is in group g
    # gbc_ref:  (G_p, n_out_p)       1.0 where channel c is in group g
    # gbcg_ref: (G_p, n_out_p)       gamma[c] where channel c is in group g
    # o_ref:    (tm, n_out_p)
    out = jnp.dot(x_ref[...], wt_ref[...], preferred_element_type=jnp.float32)

    # Per-sample, per-group mean (MXU indicator matmul), broadcast to channels.
    mean_g = jnp.dot(out, gavg_ref[...], preferred_element_type=jnp.float32)     # (tm, G_p)
    mean_c = jnp.dot(mean_g, gbc_ref[...], preferred_element_type=jnp.float32)   # (tm, n_out_p)

    # Two-pass variance: center first, then average the squares per group.
    centered = out - mean_c
    var_g = jnp.dot(centered * centered, gavg_ref[...],
                    preferred_element_type=jnp.float32)                           # (tm, G_p)

    # rsqrt at group granularity (cheap EUP), gamma folded into the broadcast.
    s_g = lax.rsqrt(jnp.maximum(var_g, 0.0) + EPS)                                # (tm, G_p)
    scale_c = jnp.dot(s_g, gbcg_ref[...], preferred_element_type=jnp.float32)     # = rsqrt * gamma

    y = centered * scale_c + beta_ref[...]
    o_ref[...] = jnp.maximum(y, 0.0).astype(o_ref.dtype)                          # ReLU (act=True)


def linear_gn_relu(x, weight, gamma, beta, *, ng=32, tm=256, compute_dtype=None):
    """x: (N, n_in); weight: (n_out, n_in); gamma/beta: (n_out,).

    compute_dtype: optionally jnp.bfloat16 on v6e/v7x for the main matmul
    operands (accumulation and all GroupNorm math stay f32).
    """
    N, n_in = x.shape
    n_out, n_in_w = weight.shape
    assert n_in_w == n_in
    G = gcd(ng, n_out)           # matches the PyTorch module (GroupNorm(gcd(ng, n_out), n_out))
    gsize = n_out // G

    # Lane / sublane friendly padded sizes.
    n_in_p = _round_up(n_in, 128)
    n_out_p = _round_up(n_out, 128)
    G_p = _round_up(G, 128)

    # Batch tile: multiple of 8 (f32 sublanes), capped by the (padded) batch.
    tm = max(8, min(_round_up(tm, 8), _round_up(N, 8)))
    N_p = _round_up(N, tm)

    cdt = compute_dtype if compute_dtype is not None else x.dtype

    # Zero-padded operands (zeros are neutral for the matmul and group stats).
    x_p = jnp.zeros((N_p, n_in_p), cdt).at[:N, :n_in].set(x.astype(cdt))
    wt_p = jnp.zeros((n_in_p, n_out_p), cdt).at[:n_in, :n_out].set(weight.T.astype(cdt))

    # Group indicator matrices (channel c -> group c // gsize), padded.
    ch = jnp.arange(n_out)
    grp = ch // gsize
    onehot = (grp[:, None] == jnp.arange(G)[None, :]).astype(jnp.float32)   # (n_out, G)
    gavg = jnp.zeros((n_out_p, G_p), jnp.float32).at[:n_out, :G].set(onehot / float(gsize))
    gbc = jnp.zeros((G_p, n_out_p), jnp.float32).at[:G, :n_out].set(onehot.T)
    gbcg = jnp.zeros((G_p, n_out_p), jnp.float32).at[:G, :n_out].set(
        onehot.T * gamma[None, :].astype(jnp.float32))
    beta_p = jnp.zeros((1, n_out_p), jnp.float32).at[0, :n_out].set(beta.astype(jnp.float32))

    grid = (N_p // tm,)

    itemsize = jnp.dtype(cdt).itemsize
    cost = pl.CostEstimate(
        flops=2 * N_p * n_in_p * n_out_p + 6 * N_p * n_out_p * G_p,
        transcendentals=N_p * G_p,
        bytes_accessed=(N_p * n_in_p * itemsize          # x
                        + n_in_p * n_out_p * itemsize    # W^T
                        + N_p * n_out_p * 4),            # y
    )

    out_p = pl.pallas_call(
        _linear_gn_relu_kernel,
        out_shape=jax.ShapeDtypeStruct((N_p, n_out_p), x.dtype),
        grid_spec=pltpu.PrefetchScalarGridSpec(
            num_scalar_prefetch=0,
            grid=grid,
            in_specs=[
                pl.BlockSpec((tm, n_in_p), lambda i: (i, 0)),
                pl.BlockSpec((n_in_p, n_out_p), lambda i: (0, 0)),
                pl.BlockSpec((1, n_out_p), lambda i: (0, 0)),
                pl.BlockSpec((n_out_p, G_p), lambda i: (0, 0)),
                pl.BlockSpec((G_p, n_out_p), lambda i: (0, 0)),
                pl.BlockSpec((G_p, n_out_p), lambda i: (0, 0)),
            ],
            out_specs=pl.BlockSpec((tm, n_out_p), lambda i: (i, 0)),
        ),
        compiler_params=pltpu.CompilerParams(
            dimension_semantics=("parallel",)),
        cost_estimate=cost,
    )(x_p, wt_p, beta_p, gavg, gbc, gbcg)

    return out_p[:N, :n_out]


def reference(x, weight, gamma, beta, *, ng=32):
    """Pure-JAX reference matching PyTorch Linear(bias=False)+GroupNorm+ReLU."""
    n_out = weight.shape[0]
    G = gcd(ng, n_out)
    out = jnp.dot(x, weight.T, precision=lax.Precision.HIGHEST)   # (N, n_out)
    o = out.reshape(x.shape[0], G, n_out // G)
    mu = o.mean(axis=-1, keepdims=True)
    var = ((o - mu) ** 2).mean(axis=-1, keepdims=True)            # biased
    o = (o - mu) / jnp.sqrt(var + EPS)
    o = o.reshape(x.shape[0], n_out) * gamma[None, :] + beta[None, :]
    return jnp.maximum(o, 0.0)


if __name__ == "__main__":
    # Small deterministic setup: Linear(n_in=32, n_out=64, norm='GN', ng=32, act=True)
    N, n_in, n_out, ng = 64, 32, 64, 32

    key = jax.random.PRNGKey(0)
    kx, kw, kg, kb = jax.random.split(key, 4)
    x = jax.random.normal(kx, (N, n_in), dtype=jnp.float32)
    weight = jax.random.normal(kw, (n_out, n_in), dtype=jnp.float32) * 0.1
    gamma = 1.0 + 0.1 * jax.random.normal(kg, (n_out,), dtype=jnp.float32)
    beta = 0.1 * jax.random.normal(kb, (n_out,), dtype=jnp.float32)

    y = linear_gn_relu(x, weight, gamma, beta, ng=ng, tm=256)
    y = jax.block_until_ready(y)

    y_ref = reference(x, weight, gamma, beta, ng=ng)
    assert y.shape == (N, n_out)
    max_diff = float(jnp.max(jnp.abs(y - y_ref)))
    assert jnp.allclose(y, y_ref, atol=5e-3, rtol=5e-3), f"mismatch vs reference (max |diff|={max_diff})"

    print("KERNEL_OK")
</pallas_src>

<mosaic_0001>
module attributes {stable_mosaic.version = 11 : i64} {
  func.func @_linear_gn_relu_kernel(%arg0: i32, %arg1: memref<64x128xf32, #tpu.memory_space<vmem>>, %arg2: memref<128x128xf32, #tpu.memory_space<vmem>>, %arg3: memref<1x128xf32, #tpu.memory_space<vmem>>, %arg4: memref<128x128xf32, #tpu.memory_space<vmem>>, %arg5: memref<128x128xf32, #tpu.memory_space<vmem>>, %arg6: memref<128x128xf32, #tpu.memory_space<vmem>>, %arg7: memref<64x128xf32, #tpu.memory_space<vmem>>) attributes {dimension_semantics = [#tpu.dimension_semantics<parallel>], iteration_bounds = array<i64: 1>, scalar_prefetch = 0 : i64, scratch_operands = 0 : i64, tpu.core_type = #tpu.core_type<tc>, window_params = [{transform_indices = @transform_0, window_bounds = array<i64: 64, 128>}, {pipeline_mode = #tpu.pipeline_mode<synchronous>, transform_indices = @transform_1, window_bounds = array<i64: 128, 128>}, {pipeline_mode = #tpu.pipeline_mode<synchronous>, transform_indices = @transform_2, window_bounds = array<i64: 1, 128>}, {pipeline_mode = #tpu.pipeline_mode<synchronous>, transform_indices = @transform_3, window_bounds = array<i64: 128, 128>}, {pipeline_mode = #tpu.pipeline_mode<synchronous>, transform_indices = @transform_4, window_bounds = array<i64: 128, 128>}, {pipeline_mode = #tpu.pipeline_mode<synchronous>, transform_indices = @transform_5, window_bounds = array<i64: 128, 128>}, {transform_indices = @transform_6, window_bounds = array<i64: 64, 128>}]} {
    %c0 = arith.constant 0 : index
    %c0_0 = arith.constant 0 : index
    %0 = vector.load %arg1[%c0, %c0_0] : memref<64x128xf32, #tpu.memory_space<vmem>>, vector<64x128xf32>
    %c0_1 = arith.constant 0 : index
    %c0_2 = arith.constant 0 : index
    %1 = vector.load %arg2[%c0_1, %c0_2] : memref<128x128xf32, #tpu.memory_space<vmem>>, vector<128x128xf32>
    %cst = arith.constant dense<0.000000e+00> : vector<64x128xf32>
    %2 = tpu.matmul %0, %1, %cst {dimension_numbers = #tpu.dot_dimension_numbers<[1], [0], [0], [1], [0, 0, 1, 1], [], []>} : vector<64x128xf32>, vector<128x128xf32>, vector<64x128xf32> -> vector<64x128xf32>
    %c0_3 = arith.constant 0 : index
    %c0_4 = arith.constant 0 : index
    %3 = vector.load %arg4[%c0_3, %c0_4] : memref<128x128xf32, #tpu.memory_space<vmem>>, vector<128x128xf32>
    %cst_5 = arith.constant dense<0.000000e+00> : vector<64x128xf32>
    %4 = tpu.matmul %2, %3, %cst_5 {dimension_numbers = #tpu.dot_dimension_numbers<[1], [0], [0], [1], [0, 0, 1, 1], [], []>} : vector<64x128xf32>, vector<128x128xf32>, vector<64x128xf32> -> vector<64x128xf32>
    %c0_6 = arith.constant 0 : index
    %c0_7 = arith.constant 0 : index
    %5 = vector.load %arg5[%c0_6, %c0_7] : memref<128x128xf32, #tpu.memory_space<vmem>>, vector<128x128xf32>
    %cst_8 = arith.constant dense<0.000000e+00> : vector<64x128xf32>
    %6 = tpu.matmul %4, %5, %cst_8 {dimension_numbers = #tpu.dot_dimension_numbers<[1], [0], [0], [1], [0, 0, 1, 1], [], []>} : vector<64x128xf32>, vector<128x128xf32>, vector<64x128xf32> -> vector<64x128xf32>
    %7 = arith.subf %2, %6 : vector<64x128xf32>
    %8 = arith.mulf %7, %7 : vector<64x128xf32>
    %c0_9 = arith.constant 0 : index
    %c0_10 = arith.constant 0 : index
    %9 = vector.load %arg4[%c0_9, %c0_10] : memref<128x128xf32, #tpu.memory_space<vmem>>, vector<128x128xf32>
    %cst_11 = arith.constant dense<0.000000e+00> : vector<64x128xf32>
    %10 = tpu.matmul %8, %9, %cst_11 {dimension_numbers = #tpu.dot_dimension_numbers<[1], [0], [0], [1], [0, 0, 1, 1], [], []>} : vector<64x128xf32>, vector<128x128xf32>, vector<64x128xf32> -> vector<64x128xf32>
    %cst_12 = arith.constant 0.000000e+00 : f32
    %11 = vector.broadcast %cst_12 : f32 to vector<64x128xf32>
    %12 = arith.maximumf %10, %11 : vector<64x128xf32>
    %cst_13 = arith.constant 9.99999974E-6 : f32
    %13 = vector.broadcast %cst_13 : f32 to vector<64x128xf32>
    %14 = arith.addf %12, %13 : vector<64x128xf32>
    %15 = math.rsqrt %14 : vector<64x128xf32>
    %c0_14 = arith.constant 0 : index
    %c0_15 = arith.constant 0 : index
    %16 = vector.load %arg6[%c0_14, %c0_15] : memref<128x128xf32, #tpu.memory_space<vmem>>, vector<128x128xf32>
    %cst_16 = arith.constant dense<0.000000e+00> : vector<64x128xf32>
    %17 = tpu.matmul %15, %16, %cst_16 {dimension_numbers = #tpu.dot_dimension_numbers<[1], [0], [0], [1], [0, 0, 1, 1], [], []>} : vector<64x128xf32>, vector<128x128xf32>, vector<64x128xf32> -> vector<64x128xf32>
    %18 = arith.mulf %7, %17 : vector<64x128xf32>
    %c0_17 = arith.constant 0 : index
    %c0_18 = arith.constant 0 : index
    %19 = vector.load %arg3[%c0_17, %c0_18] : memref<1x128xf32, #tpu.memory_space<vmem>>, vector<1x128xf32>
    %20 = vector.broadcast %19 : vector<1x128xf32> to vector<64x128xf32>
    %21 = arith.addf %18, %20 : vector<64x128xf32>
    %cst_19 = arith.constant 0.000000e+00 : f32
    %22 = vector.broadcast %cst_19 : f32 to vector<64x128xf32>
    %23 = arith.maximumf %21, %22 : vector<64x128xf32>
    %c0_20 = arith.constant 0 : index
    %c0_21 = arith.constant 0 : index
    %24 = vector.load %arg7[%c0_20, %c0_21] : memref<64x128xf32, #tpu.memory_space<vmem>>, vector<64x128xf32>
    tpu.vector_store %arg7[%c0_20, %c0_21], %23 {strides = array<i32>} : memref<64x128xf32, #tpu.memory_space<vmem>>, vector<64x128xf32>,
    return
  }
  func.func @transform_0(%arg0: i32) -> (i32, i32) {
    %c0_i32 = arith.constant 0 : i32
    %c0_i32_0 = arith.constant 0 : i32
    return %arg0, %c0_i32 : i32, i32
  }
  func.func @transform_1(%arg0: i32) -> (i32, i32) {
    %c0_i32 = arith.constant 0 : i32
    %c0_i32_0 = arith.constant 0 : i32
    %c0_i32_1 = arith.constant 0 : i32
    return %c0_i32, %c0_i32_0 : i32, i32
  }
  func.func @transform_2(%arg0: i32) -> (i32, i32) {
    %c0_i32 = arith.constant 0 : i32
    %c0_i32_0 = arith.constant 0 : i32
    %c0_i32_1 = arith.constant 0 : i32
    return %c0_i32, %c0_i32_0 : i32, i32
  }
  func.func @transform_3(%arg0: i32) -> (i32, i32) {
    %c0_i32 = arith.constant 0 : i32
    %c0_i32_0 = arith.constant 0 : i32
    %c0_i32_1 = arith.constant 0 : i32
    return %c0_i32, %c0_i32_0 : i32, i32
  }
  func.func @transform_4(%arg0: i32) -> (i32, i32) {
    %c0_i32 = arith.constant 0 : i32
    %c0_i32_0 = arith.constant 0 : i32
    %c0_i32_1 = arith.constant 0 : i32
    return %c0_i32, %c0_i32_0 : i32, i32
  }
  func.func @transform_5(%arg0: i32) -> (i32, i32) {
    %c0_i32 = arith.constant 0 : i32
    %c0_i32_0 = arith.constant 0 : i32
    %c0_i32_1 = arith.constant 0 : i32
    return %c0_i32, %c0_i32_0 : i32, i32
  }
  func.func @transform_6(%arg0: i32) -> (i32, i32) {
    %c0_i32 = arith.constant 0 : i32
    %c0_i32_0 = arith.constant 0 : i32
    return %arg0, %c0_i32 : i32, i32
  }
}

</mosaic_0001>

<llo_original>
// kernel: tpu_custom_call.1
$region0: #{tpu_custom_call.1}
  #allocation0 [shape = 'u32[]', space=smem, size = 0x4, offset = 0x4, fixed_abs, tag = 'smem constant byte address 0x4 - core index']
  #allocation1 [shape = 'u32[144,128]{1,0:T(1,128)}', space=vmem, size = 0x12000, scoped, tag = 'internal scratch']
  %s0 = inlined_call_operand.hbm [shape: f32[64,128], index: 0, kind: input, shape index: {}]
  %s1 = inlined_call_operand.hbm [shape: f32[128,128], index: 1, kind: input, shape index: {}]
  %s2 = inlined_call_operand.vmem [shape: f32[1,128], index: 2, kind: input, shape index: {}]
  %s3 = inlined_call_operand.hbm [shape: f32[128,128], index: 3, kind: input, shape index: {}]
  %s4 = inlined_call_operand.hbm [shape: f32[128,128], index: 4, kind: input, shape index: {}]
  %s5 = inlined_call_operand.hbm [shape: f32[128,128], index: 5, kind: input, shape index: {}]
  %s6 = inlined_call_operand.hbm [shape: f32[64,128], index: 6, kind: output, shape index: {}]
  %s7 = sld [smem:[#allocation0]]
  $region54: #{tpu_custom_call.1} parent=0
    _
  %s9 = ssub.s32 1, %s7
  %s10 = scalar_select 0, %s9, %s7
  $region1: #{tpu_custom_call.1} parent=0
    #allocation2 [shape = 'u8[32768]{0}', space=vmem, size = 0x8000, scoped, tag = 'input window, operand 0, single buffered']
    #allocation3 [shape = 's32[1]{0}', space=sflag, size = 0x4, scoped, tag = 'scoped memory for tpu_custom_call.1']
    #allocation4 [shape = 's32[1]{0}', space=sflag, size = 0x4, scoped, tag = 'scoped memory for tpu_custom_call.1']
    #allocation5 [shape = 'u8[65536]{0}', space=vmem, size = 0x10000, scoped, tag = 'input window, operand 1, single buffered']
    #allocation6 [shape = 's32[1]{0}', space=sflag, size = 0x4, scoped, tag = 'scoped memory for tpu_custom_call.1']
    #allocation7 [shape = 'u8[65536]{0}', space=vmem, size = 0x10000, scoped, tag = 'input window, operand 3, single buffered']
    #allocation8 [shape = 'u8[65536]{0}', space=vmem, size = 0x10000, scoped, tag = 'input window, operand 4, single buffered']
    #allocation9 [shape = 's32[1]{0}', space=sflag, size = 0x4, scoped, tag = 'scoped memory for tpu_custom_call.1']
    #allocation10 [shape = 'u8[65536]{0}', space=vmem, size = 0x10000, scoped, tag = 'input window, operand 5, single buffered']
    #allocation11 [shape = 'u8[32768]{0}', space=vmem, size = 0x8000, scoped, tag = 'output window, operand 0, single buffered']
    %11 = vsyncpa [#allocation3], 0
    %12 = vsyncpa [#allocation6], 0
    %13 = vsyncpa [#allocation9], 0
    %14 = vsyncpa [#allocation4], 0
    // Predicated region
    $region2: #{tpu_custom_call.1} parent=1 // pred_check
      _
    $region3: #{tpu_custom_call.1} parent=1 // pred_check_branch
      %16 = sbr.rel (0) target = $region5
    $region4: #{tpu_custom_call.1} parent=1 // pred_region
      %s18 = ssub.s32 1024, 1024
      %19 = vsyncadd [#allocation3], %s18
      %s20 = sshll.u32 [#allocation2], 4
      %s21 = int_to_ptr.vmem [resolvable:$true] %s20
      %26 = dma.hbm_to_vmem [thread:$0]  %s0, 1024, %s21, [#allocation3], 128, 128, 8
    $region5: #{tpu_custom_call.1} parent=1 // pred_fallthru
      _
    // Predicated region
    $region6: #{tpu_custom_call.1} parent=1 // pred_check
      _
    $region7: #{tpu_custom_call.1} parent=1 // pred_check_branch
      %28 = sbr.rel (0) target = $region9
    $region8: #{tpu_custom_call.1} parent=1 // pred_region
      %s30 = ssub.s32 2048, 2048
      %31 = vsyncadd [#allocation6], %s30
      %s32 = sshll.u32 [#allocation5], 4
      %s33 = int_to_ptr.vmem [resolvable:$true] %s32
      %38 = dma.hbm_to_vmem [thread:$0]  %s1, 2048, %s33, [#allocation6], 128, 128, 8
    $region9: #{tpu_custom_call.1} parent=1 // pred_fallthru
      _
    // Predicated region
    $region10: #{tpu_custom_call.1} parent=1 // pred_check
      _
    $region11: #{tpu_custom_call.1} parent=1 // pred_check_branch
      %40 = sbr.rel (0) target = $region13
    $region12: #{tpu_custom_call.1} parent=1 // pred_region
      _
    $region13: #{tpu_custom_call.1} parent=1 // pred_fallthru
      _
    // Predicated region
    $region14: #{tpu_custom_call.1} parent=1 // pred_check
      _
    $region15: #{tpu_custom_call.1} parent=1 // pred_check_branch
      %42 = sbr.rel (0) target = $region17
    $region16: #{tpu_custom_call.1} parent=1 // pred_region
      %s44 = ssub.s32 2048, 2048
      %45 = vsyncadd [#allocation6], %s44
      %s46 = sshll.u32 [#allocation7], 4
      %s47 = int_to_ptr.vmem [resolvable:$true] %s46
      %52 = dma.hbm_to_vmem [thread:$0]  %s3, 2048, %s47, [#allocation6], 128, 128, 8
    $region17: #{tpu_custom_call.1} parent=1 // pred_fallthru
      _
    // Predicated region
    $region18: #{tpu_custom_call.1} parent=1 // pred_check
      _
    $region19: #{tpu_custom_call.1} parent=1 // pred_check_branch
      %54 = sbr.rel (0) target = $region21
    $region20: #{tpu_custom_call.1} parent=1 // pred_region
      %s56 = ssub.s32 2048, 2048
      %57 = vsyncadd [#allocation9], %s56
      %s58 = sshll.u32 [#allocation8], 4
      %s59 = int_to_ptr.vmem [resolvable:$true] %s58
      %64 = dma.hbm_to_vmem [thread:$0]  %s4, 2048, %s59, [#allocation9], 128, 128, 8
    $region21: #{tpu_custom_call.1} parent=1 // pred_fallthru
      _
    // Predicated region
    $region22: #{tpu_custom_call.1} parent=1 // pred_check
      _
    $region23: #{tpu_custom_call.1} parent=1 // pred_check_branch
      %66 = sbr.rel (0) target = $region25
    $region24: #{tpu_custom_call.1} parent=1 // pred_region
      %s68 = ssub.s32 2048, 2048
      %69 = vsyncadd [#allocation9], %s68
      %s70 = sshll.u32 [#allocation10], 4
      %s71 = int_to_ptr.vmem [resolvable:$true] %s70
      %76 = dma.hbm_to_vmem [thread:$0]  %s5, 2048, %s71, [#allocation9], 128, 128, 8
    $region25: #{tpu_custom_call.1} parent=1 // pred_fallthru
      _
    // Predicated region
    $region26: #{tpu_custom_call.1} parent=1 // pred_check
      _
    $region27: #{tpu_custom_call.1} parent=1 // pred_check_branch
      %78 = sbr.rel (0) target = $region29
    $region28: #{tpu_custom_call.1} parent=1 // pred_region
      %79 = dma.done [#allocation3], 1024
    $region29: #{tpu_custom_call.1} parent=1 // pred_fallthru
      _
    // Predicated region
    $region30: #{tpu_custom_call.1} parent=1 // pred_check
      _
    $region31: #{tpu_custom_call.1} parent=1 // pred_check_branch
      %81 = sbr.rel (0) target = $region33
    $region32: #{tpu_custom_call.1} parent=1 // pred_region
      %82 = dma.done [#allocation6], 2048
    $region33: #{tpu_custom_call.1} parent=1 // pred_fallthru
      _
    // Predicated region
    $region34: #{tpu_custom_call.1} parent=1 // pred_check
      _
    $region35: #{tpu_custom_call.1} parent=1 // pred_check_branch
      %84 = sbr.rel (0) target = $region37
    $region36: #{tpu_custom_call.1} parent=1 // pred_region
      %85 = dma.done [#allocation6], 2048
    $region37: #{tpu_custom_call.1} parent=1 // pred_fallthru
      _
    // Predicated region
    $region38: #{tpu_custom_call.1} parent=1 // pred_check
      _
    $region39: #{tpu_custom_call.1} parent=1 // pred_check_branch
      %87 = sbr.rel (0) target = $region41
    $region40: #{tpu_custom_call.1} parent=1 // pred_region
      %88 = dma.done [#allocation9], 2048
    $region41: #{tpu_custom_call.1} parent=1 // pred_fallthru
      _
    // Predicated region
    $region42: #{tpu_custom_call.1} parent=1 // pred_check
      _
    $region43: #{tpu_custom_call.1} parent=1 // pred_check_branch
      %90 = sbr.rel (0) target = $region45
    $region44: #{tpu_custom_call.1} parent=1 // pred_region
      %91 = dma.done [#allocation9], 2048
    $region45: #{tpu_custom_call.1} parent=1 // pred_fallthru
      _
    %v92 = vld [vmem:[#allocation2] sm:$0xff]
    %v93 = vld [vmem:[#allocation2 + $0x8] sm:$0xff]
    %v94 = vld [vmem:[#allocation2 + $0x10] sm:$0xff]
    %v95 = vld [vmem:[#allocation2 + $0x18] sm:$0xff]
    %v96 = vld [vmem:[#allocation2 + $0x20] sm:$0xff]
    %v97 = vld [vmem:[#allocation2 + $0x28] sm:$0xff]
    %v98 = vld [vmem:[#allocation2 + $0x30] sm:$0xff]
    %v99 = vld [vmem:[#allocation2 + $0x38] sm:$0xff]
    %v100 = vld [vmem:[#allocation5] sm:$0xff]
    %v101 = vld [vmem:[#allocation5 + $0x8] sm:$0xff]
    %v102 = vld [vmem:[#allocation5 + $0x10] sm:$0xff]
    %v103 = vld [vmem:[#allocation5 + $0x18] sm:$0xff]
    %v104 = vld [vmem:[#allocation5 + $0x20] sm:$0xff]
    %v105 = vld [vmem:[#allocation5 + $0x28] sm:$0xff]
    %v106 = vld [vmem:[#allocation5 + $0x30] sm:$0xff]
    %v107 = vld [vmem:[#allocation5 + $0x38] sm:$0xff]
    %v108 = vld [vmem:[#allocation5 + $0x40] sm:$0xff]
    %v109 = vld [vmem:[#allocation5 + $0x48] sm:$0xff]
    %v110 = vld [vmem:[#allocation5 + $0x50] sm:$0xff]
    %v111 = vld [vmem:[#allocation5 + $0x58] sm:$0xff]
    %v112 = vld [vmem:[#allocation5 + $0x60] sm:$0xff]
    %v113 = vld [vmem:[#allocation5 + $0x68] sm:$0xff]
    %v114 = vld [vmem:[#allocation5 + $0x70] sm:$0xff]
    %v115 = vld [vmem:[#allocation5 + $0x78] sm:$0xff]
    %116 = vmatprep.subr.mxu0 0.0
    %117 = vmatpush1.msra.mxu0 %v115
    %118 = vmatprep.subr.mxu0 0.0
    %119 = vmatpush1.msra.mxu0 %v114
    %120 = vmatprep.subr.mxu0 0.0
    %121 = vmatpush1.msra.mxu0 %v113
    %122 = vmatprep.subr.mxu0 0.0
    %123 = vmatpush1.msra.mxu0 %v112
    %124 = vmatprep.subr.mxu0 0.0
    %125 = vmatpush1.msra.mxu0 %v111
    %126 = vmatprep.subr.mxu0 0.0
    %127 = vmatpush1.msra.mxu0 %v110
    %128 = vmatprep.subr.mxu0 0.0
    %129 = vmatpush1.msra.mxu0 %v109
    %130 = vmatprep.subr.mxu0 0.0
    %131 = vmatpush1.msra.mxu0 %v108
    %132 = vmatprep.subr.mxu0 0.0
    %133 = vmatpush1.msra.mxu0 %v107
    %134 = vmatprep.subr.mxu0 0.0
    %135 = vmatpush1.msra.mxu0 %v106
    %136 = vmatprep.subr.mxu0 0.0
    %137 = vmatpush1.msra.mxu0 %v105
    %138 = vmatprep.subr.mxu0 0.0
    %139 = vmatpush1.msra.mxu0 %v104
    %140 = vmatprep.subr.mxu0 0.0
    %141 = vmatpush1.msra.mxu0 %v103
    %142 = vmatprep.subr.mxu0 0.0
    %143 = vmatpush1.msra.mxu0 %v102
    %144 = vmatprep.subr.mxu0 0.0
    %145 = vmatpush1.msra.mxu0 %v101
    %146 = vmatprep.subr.mxu0 0.0
    %147 = vmatpush1.msra.mxu0 %v100
    %148 = vmatprep.subr.mxu0 0.0
    %149 = vmatpush2.msra.mxu0 0.0
    %150 = vmatprep.subr.mxu0 0.0
    %151 = vmatpush2.msra.mxu0 0.0
    %152 = vmatprep.subr.mxu0 0.0
    %153 = vmatpush2.msra.mxu0 0.0
    %154 = vmatprep.subr.mxu0 0.0
    %155 = vmatpush2.msra.mxu0 0.0
    %156 = vmatprep.subr.mxu0 0.0
    %157 = vmatpush2.msra.mxu0 0.0
    %158 = vmatprep.subr.mxu0 0.0
    %159 = vmatpush2.msra.mxu0 0.0
    %160 = vmatprep.subr.mxu0 0.0
    %161 = vmatpush2.msra.mxu0 0.0
    %162 = vmatprep.subr.mxu0 0.0
    %163 = vmatpush2.msra.mxu0 0.0
    %164 = vmatprep.subr.mxu0 0.0
    %165 = vmatpush2.msra.mxu0 0.0
    %166 = vmatprep.subr.mxu0 0.0
    %167 = vmatpush2.msra.mxu0 0.0
    %168 = vmatprep.subr.mxu0 0.0
    %169 = vmatpush2.msra.mxu0 0.0
    %170 = vmatprep.subr.mxu0 0.0
    %171 = vmatpush2.msra.mxu0 0.0
    %172 = vmatprep.subr.mxu0 0.0
    %173 = vmatpush2.msra.mxu0 0.0
    %174 = vmatprep.subr.mxu0 0.0
    %175 = vmatpush2.msra.mxu0 0.0
    %176 = vmatprep.subr.mxu0 0.0
    %177 = vmatpush2.msra.mxu0 0.0
    %178 = vmatprep.subr.mxu0 0.0
    %179 = vmatpush2.msra.mxu0 0.0
    %180 = vmatprep.mubr.f32.mxu0 0.0
    %181 = vmatmul.mubr.f32.gmra.mxu0 %v92
    %v182 = vpop.f32.mrf.mxu0
    %v183 = vadd.f32 0.0, %v182
    %v184 = vpop.f32.mrf.mxu0
    %185 = vmatprep.mubr.f32.mxu0 0.0
    %186 = vmatmul.mubr.f32.gmra.mxu0 %v93
    %v187 = vpop.f32.mrf.mxu0
    %v188 = vadd.f32 0.0, %v187
    %v189 = vpop.f32.mrf.mxu0
    %190 = vmatprep.mubr.f32.mxu0 0.0
    %191 = vmatmul.mubr.f32.gmra.mxu0 %v94
    %v192 = vpop.f32.mrf.mxu0
    %v193 = vadd.f32 0.0, %v192
    %v194 = vpop.f32.mrf.mxu0
    %195 = vmatprep.mubr.f32.mxu0 0.0
    %196 = vmatmul.mubr.f32.gmra.mxu0 %v95
    %v197 = vpop.f32.mrf.mxu0
    %v198 = vadd.f32 0.0, %v197
    %v199 = vpop.f32.mrf.mxu0
    %200 = vmatprep.mubr.f32.mxu0 0.0
    %201 = vmatmul.mubr.f32.gmra.mxu0 %v96
    %v202 = vpop.f32.mrf.mxu0
    %v203 = vadd.f32 0.0, %v202
    %v204 = vpop.f32.mrf.mxu0
    %205 = vmatprep.mubr.f32.mxu0 0.0
    %206 = vmatmul.mubr.f32.gmra.mxu0 %v97
    %v207 = vpop.f32.mrf.mxu0
    %v208 = vadd.f32 0.0, %v207
    %v209 = vpop.f32.mrf.mxu0
    %210 = vmatprep.mubr.f32.mxu0 0.0
    %211 = vmatmul.mubr.f32.gmra.mxu0 %v98
    %v212 = vpop.f32.mrf.mxu0
    %v213 = vadd.f32 0.0, %v212
    %v214 = vpop.f32.mrf.mxu0
    %215 = vmatprep.mubr.f32.mxu0 0.0
    %216 = vmatmul.mubr.f32.gmra.mxu0 %v99
    %v217 = vpop.f32.mrf.mxu0
    %v218 = vadd.f32 0.0, %v217
    %v219 = vpop.f32.mrf.mxu0
    %220 = vdwg.mxu0
    %v221 = vld [vmem:[#allocation7] sm:$0xff]
    %v222 = vld [vmem:[#allocation7 + $0x8] sm:$0xff]
    %v223 = vld [vmem:[#allocation7 + $0x10] sm:$0xff]
    %v224 = vld [vmem:[#allocation7 + $0x18] sm:$0xff]
    %v225 = vld [vmem:[#allocation7 + $0x20] sm:$0xff]
    %v226 = vld [vmem:[#allocation7 + $0x28] sm:$0xff]
    %v227 = vld [vmem:[#allocation7 + $0x30] sm:$0xff]
    %v228 = vld [vmem:[#allocation7 + $0x38] sm:$0xff]
    %v229 = vld [vmem:[#allocation7 + $0x40] sm:$0xff]
    %v230 = vld [vmem:[#allocation7 + $0x48] sm:$0xff]
    %v231 = vld [vmem:[#allocation7 + $0x50] sm:$0xff]
    %v232 = vld [vmem:[#allocation7 + $0x58] sm:$0xff]
    %v233 = vld [vmem:[#allocation7 + $0x60] sm:$0xff]
    %v234 = vld [vmem:[#allocation7 + $0x68] sm:$0xff]
    %v235 = vld [vmem:[#allocation7 + $0x70] sm:$0xff]
    %v236 = vld [vmem:[#allocation7 + $0x78] sm:$0xff]
    %237 = vmatprep.subr.mxu0 0.0
    %238 = vmatpush1.msra.mxu0 %v236
    %239 = vmatprep.subr.mxu0 0.0
    %240 = vmatpush1.msra.mxu0 %v235
    %241 = vmatprep.subr.mxu0 0.0
    %242 = vmatpush1.msra.mxu0 %v234
    %243 = vmatprep.subr.mxu0 0.0
    %244 = vmatpush1.msra.mxu0 %v233
    %245 = vmatprep.subr.mxu0 0.0
    %246 = vmatpush1.msra.mxu0 %v232
    %247 = vmatprep.subr.mxu0 0.0
    %248 = vmatpush1.msra.mxu0 %v231
    %249 = vmatprep.subr.mxu0 0.0
    %250 = vmatpush1.msra.mxu0 %v230
    %251 = vmatprep.subr.mxu0 0.0
    %252 = vmatpush1.msra.mxu0 %v229
    %253 = vmatprep.subr.mxu0 0.0
    %254 = vmatpush1.msra.mxu0 %v228
    %255 = vmatprep.subr.mxu0 0.0
    %256 = vmatpush1.msra.mxu0 %v227
    %257 = vmatprep.subr.mxu0 0.0
    %258 = vmatpush1.msra.mxu0 %v226
    %259 = vmatprep.subr.mxu0 0.0
    %260 = vmatpush1.msra.mxu0 %v225
    %261 = vmatprep.subr.mxu0 0.0
    %262 = vmatpush1.msra.mxu0 %v224
    %263 = vmatprep.subr.mxu0 0.0
    %264 = vmatpush1.msra.mxu0 %v223
    %265 = vmatprep.subr.mxu0 0.0
    %266 = vmatpush1.msra.mxu0 %v222
    %267 = vmatprep.subr.mxu0 0.0
    %268 = vmatpush1.msra.mxu0 %v221
    %269 = vmatprep.subr.mxu0 0.0
    %270 = vmatpush2.msra.mxu0 0.0
    %271 = vmatprep.subr.mxu0 0.0
    %272 = vmatpush2.msra.mxu0 0.0
    %273 = vmatprep.subr.mxu0 0.0
    %274 = vmatpush2.msra.mxu0 0.0
    %275 = vmatprep.subr.mxu0 0.0
    %276 = vmatpush2.msra.mxu0 0.0
    %277 = vmatprep.subr.mxu0 0.0
    %278 = vmatpush2.msra.mxu0 0.0
    %279 = vmatprep.subr.mxu0 0.0
    %280 = vmatpush2.msra.mxu0 0.0
    %281 = vmatprep.subr.mxu0 0.0
    %282 = vmatpush2.msra.mxu0 0.0
    %283 = vmatprep.subr.mxu0 0.0
    %284 = vmatpush2.msra.mxu0 0.0
    %285 = vmatprep.subr.mxu0 0.0
    %286 = vmatpush2.msra.mxu0 0.0
    %287 = vmatprep.subr.mxu0 0.0
    %288 = vmatpush2.msra.mxu0 0.0
    %289 = vmatprep.subr.mxu0 0.0
    %290 = vmatpush2.msra.mxu0 0.0
    %291 = vmatprep.subr.mxu0 0.0
    %292 = vmatpush2.msra.mxu0 0.0
    %293 = vmatprep.subr.mxu0 0.0
    %294 = vmatpush2.msra.mxu0 0.0
    %295 = vmatprep.subr.mxu0 0.0
    %296 = vmatpush2.msra.mxu0 0.0
    %297 = vmatprep.subr.mxu0 0.0
    %298 = vmatpush2.msra.mxu0 0.0
    %299 = vmatprep.subr.mxu0 0.0
    %300 = vmatpush2.msra.mxu0 0.0
    %301 = vmatprep.mubr.f32.mxu0 0.0
    %302 = vmatmul.mubr.f32.gmra.mxu0 %v183
    %v303 = vpop.f32.mrf.mxu0
    %v304 = vadd.f32 0.0, %v303
    %v305 = vpop.f32.mrf.mxu0
    %306 = vmatprep.mubr.f32.mxu0 0.0
    %307 = vmatmul.mubr.f32.gmra.mxu0 %v188
    %v308 = vpop.f32.mrf.mxu0
    %v309 = vadd.f32 0.0, %v308
    %v310 = vpop.f32.mrf.mxu0
    %311 = vmatprep.mubr.f32.mxu0 0.0
    %312 = vmatmul.mubr.f32.gmra.mxu0 %v193
    %v313 = vpop.f32.mrf.mxu0
    %v314 = vadd.f32 0.0, %v313
    %v315 = vpop.f32.mrf.mxu0
    %316 = vmatprep.mubr.f32.mxu0 0.0
    %317 = vmatmul.mubr.f32.gmra.mxu0 %v198
    %v318 = vpop.f32.mrf.mxu0
    %v319 = vadd.f32 0.0, %v318
    %v320 = vpop.f32.mrf.mxu0
    %321 = vmatprep.mubr.f32.mxu0 0.0
    %322 = vmatmul.mubr.f32.gmra.mxu0 %v203
    %v323 = vpop.f32.mrf.mxu0
    %v324 = vadd.f32 0.0, %v323
    %v325 = vpop.f32.mrf.mxu0
    %326 = vmatprep.mubr.f32.mxu0 0.0
    %327 = vmatmul.mubr.f32.gmra.mxu0 %v208
    %v328 = vpop.f32.mrf.mxu0
    %v329 = vadd.f32 0.0, %v328
    %v330 = vpop.f32.mrf.mxu0
    %331 = vmatprep.mubr.f32.mxu0 0.0
    %332 = vmatmul.mubr.f32.gmra.mxu0 %v213
    %v333 = vpop.f32.mrf.mxu0
    %v334 = vadd.f32 0.0, %v333
    %v335 = vpop.f32.mrf.mxu0
    %336 = vmatprep.mubr.f32.mxu0 0.0
    %337 = vmatmul.mubr.f32.gmra.mxu0 %v218
    %v338 = vpop.f32.mrf.mxu0
    %v339 = vadd.f32 0.0, %v338
    %v340 = vpop.f32.mrf.mxu0
    %341 = vdwg.mxu0
    %v342 = vld [vmem:[#allocation8] sm:$0xff]
    %v343 = vld [vmem:[#allocation8 + $0x8] sm:$0xff]
    %v344 = vld [vmem:[#allocation8 + $0x10] sm:$0xff]
    %v345 = vld [vmem:[#allocation8 + $0x18] sm:$0xff]
    %v346 = vld [vmem:[#allocation8 + $0x20] sm:$0xff]
    %v347 = vld [vmem:[#allocation8 + $0x28] sm:$0xff]
    %v348 = vld [vmem:[#allocation8 + $0x30] sm:$0xff]
    %v349 = vld [vmem:[#allocation8 + $0x38] sm:$0xff]
    %v350 = vld [vmem:[#allocation8 + $0x40] sm:$0xff]
    %v351 = vld [vmem:[#allocation8 + $0x48] sm:$0xff]
    %v352 = vld [vmem:[#allocation8 + $0x50] sm:$0xff]
    %v353 = vld [vmem:[#allocation8 + $0x58] sm:$0xff]
    %v354 = vld [vmem:[#allocation8 + $0x60] sm:$0xff]
    %v355 = vld [vmem:[#allocation8 + $0x68] sm:$0xff]
    %v356 = vld [vmem:[#allocation8 + $0x70] sm:$0xff]
    %v357 = vld [vmem:[#allocation8 + $0x78] sm:$0xff]
    %358 = vmatprep.subr.mxu0 0.0
    %359 = vmatpush1.msra.mxu0 %v357
    %360 = vmatprep.subr.mxu0 0.0
    %361 = vmatpush1.msra.mxu0 %v356
    %362 = vmatprep.subr.mxu0 0.0
    %363 = vmatpush1.msra.mxu0 %v355
    %364 = vmatprep.subr.mxu0 0.0
    %365 = vmatpush1.msra.mxu0 %v354
    %366 = vmatprep.subr.mxu0 0.0
    %367 = vmatpush1.msra.mxu0 %v353
    %368 = vmatprep.subr.mxu0 0.0
    %369 = vmatpush1.msra.mxu0 %v352
    %370 = vmatprep.subr.mxu0 0.0
    %371 = vmatpush1.msra.mxu0 %v351
    %372 = vmatprep.subr.mxu0 0.0
    %373 = vmatpush1.msra.mxu0 %v350
    %374 = vmatprep.subr.mxu0 0.0
    %375 = vmatpush1.msra.mxu0 %v349
    %376 = vmatprep.subr.mxu0 0.0
    %377 = vmatpush1.msra.mxu0 %v348
    %378 = vmatprep.subr.mxu0 0.0
    %379 = vmatpush1.msra.mxu0 %v347
    %380 = vmatprep.subr.mxu0 0.0
    %381 = vmatpush1.msra.mxu0 %v346
    %382 = vmatprep.subr.mxu0 0.0
    %383 = vmatpush1.msra.mxu0 %v345
    %384 = vmatprep.subr.mxu0 0.0
    %385 = vmatpush1.msra.mxu0 %v344
    %386 = vmatprep.subr.mxu0 0.0
    %387 = vmatpush1.msra.mxu0 %v343
    %388 = vmatprep.subr.mxu0 0.0
    %389 = vmatpush1.msra.mxu0 %v342
    %390 = vmatprep.subr.mxu0 0.0
    %391 = vmatpush2.msra.mxu0 0.0
    %392 = vmatprep.subr.mxu0 0.0
    %393 = vmatpush2.msra.mxu0 0.0
    %394 = vmatprep.subr.mxu0 0.0
    %395 = vmatpush2.msra.mxu0 0.0
    %396 = vmatprep.subr.mxu0 0.0
    %397 = vmatpush2.msra.mxu0 0.0
    %398 = vmatprep.subr.mxu0 0.0
    %399 = vmatpush2.msra.mxu0 0.0
    %400 = vmatprep.subr.mxu0 0.0
    %401 = vmatpush2.msra.mxu0 0.0
    %402 = vmatprep.subr.mxu0 0.0
    %403 = vmatpush2.msra.mxu0 0.0
    %404 = vmatprep.subr.mxu0 0.0
    %405 = vmatpush2.msra.mxu0 0.0
    %406 = vmatprep.subr.mxu0 0.0
    %407 = vmatpush2.msra.mxu0 0.0
    %408 = vmatprep.subr.mxu0 0.0
    %409 = vmatpush2.msra.mxu0 0.0
    %410 = vmatprep.subr.mxu0 0.0
    %411 = vmatpush2.msra.mxu0 0.0
    %412 = vmatprep.subr.mxu0 0.0
    %413 = vmatpush2.msra.mxu0 0.0
    %414 = vmatprep.subr.mxu0 0.0
    %415 = vmatpush2.msra.mxu0 0.0
    %416 = vmatprep.subr.mxu0 0.0
    %417 = vmatpush2.msra.mxu0 0.0
    %418 = vmatprep.subr.mxu0 0.0
    %419 = vmatpush2.msra.mxu0 0.0
    %420 = vmatprep.subr.mxu0 0.0
    %421 = vmatpush2.msra.mxu0 0.0
    %422 = vmatprep.mubr.f32.mxu0 0.0
    %423 = vmatmul.mubr.f32.gmra.mxu0 %v304
    %v424 = vpop.f32.mrf.mxu0
    %v425 = vadd.f32 0.0, %v424
    %v426 = vpop.f32.mrf.mxu0
    %427 = vmatprep.mubr.f32.mxu0 0.0
    %428 = vmatmul.mubr.f32.gmra.mxu0 %v309
    %v429 = vpop.f32.mrf.mxu0
    %v430 = vadd.f32 0.0, %v429
    %v431 = vpop.f32.mrf.mxu0
    %432 = vmatprep.mubr.f32.mxu0 0.0
    %433 = vmatmul.mubr.f32.gmra.mxu0 %v314
    %v434 = vpop.f32.mrf.mxu0
    %v435 = vadd.f32 0.0, %v434
    %v436 = vpop.f32.mrf.mxu0
    %437 = vmatprep.mubr.f32.mxu0 0.0
    %438 = vmatmul.mubr.f32.gmra.mxu0 %v319
    %v439 = vpop.f32.mrf.mxu0
    %v440 = vadd.f32 0.0, %v439
    %v441 = vpop.f32.mrf.mxu0
    %442 = vmatprep.mubr.f32.mxu0 0.0
    %443 = vmatmul.mubr.f32.gmra.mxu0 %v324
    %v444 = vpop.f32.mrf.mxu0
    %v445 = vadd.f32 0.0, %v444
    %v446 = vpop.f32.mrf.mxu0
    %447 = vmatprep.mubr.f32.mxu0 0.0
    %448 = vmatmul.mubr.f32.gmra.mxu0 %v329
    %v449 = vpop.f32.mrf.mxu0
    %v450 = vadd.f32 0.0, %v449
    %v451 = vpop.f32.mrf.mxu0
    %452 = vmatprep.mubr.f32.mxu0 0.0
    %453 = vmatmul.mubr.f32.gmra.mxu0 %v334
    %v454 = vpop.f32.mrf.mxu0
    %v455 = vadd.f32 0.0, %v454
    %v456 = vpop.f32.mrf.mxu0
    %457 = vmatprep.mubr.f32.mxu0 0.0
    %458 = vmatmul.mubr.f32.gmra.mxu0 %v339
    %v459 = vpop.f32.mrf.mxu0
    %v460 = vadd.f32 0.0, %v459
    %v461 = vpop.f32.mrf.mxu0
    %462 = vdwg.mxu0
    %v463 = vsub.f32 %v183, %v425
    %v464 = vsub.f32 %v188, %v430
    %v465 = vsub.f32 %v193, %v435
    %v466 = vsub.f32 %v198, %v440
    %v467 = vsub.f32 %v203, %v445
    %v468 = vsub.f32 %v208, %v450
    %v469 = vsub.f32 %v213, %v455
    %v470 = vsub.f32 %v218, %v460
    %v471 = vmul.f32 %v463, %v463
    %v472 = vmul.f32 %v464, %v464
    %v473 = vmul.f32 %v465, %v465
    %v474 = vmul.f32 %v466, %v466
    %v475 = vmul.f32 %v467, %v467
    %v476 = vmul.f32 %v468, %v468
    %v477 = vmul.f32 %v469, %v469
    %v478 = vmul.f32 %v470, %v470
    %479 = vmatprep.subr.mxu0 0.0
    %480 = vmatpush1.msra.mxu0 %v236
    %481 = vmatprep.subr.mxu0 0.0
    %482 = vmatpush1.msra.mxu0 %v235
    %483 = vmatprep.subr.mxu0 0.0
    %484 = vmatpush1.msra.mxu0 %v234
    %485 = vmatprep.subr.mxu0 0.0
    %486 = vmatpush1.msra.mxu0 %v233
    %487 = vmatprep.subr.mxu0 0.0
    %488 = vmatpush1.msra.mxu0 %v232
    %489 = vmatprep.subr.mxu0 0.0
    %490 = vmatpush1.msra.mxu0 %v231
    %491 = vmatprep.subr.mxu0 0.0
    %492 = vmatpush1.msra.mxu0 %v230
    %493 = vmatprep.subr.mxu0 0.0
    %494 = vmatpush1.msra.mxu0 %v229
    %495 = vmatprep.subr.mxu0 0.0
    %496 = vmatpush1.msra.mxu0 %v228
    %497 = vmatprep.subr.mxu0 0.0
    %498 = vmatpush1.msra.mxu0 %v227
    %499 = vmatprep.subr.mxu0 0.0
    %500 = vmatpush1.msra.mxu0 %v226
    %501 = vmatprep.subr.mxu0 0.0
    %502 = vmatpush1.msra.mxu0 %v225
    %503 = vmatprep.subr.mxu0 0.0
    %504 = vmatpush1.msra.mxu0 %v224
    %505 = vmatprep.subr.mxu0 0.0
    %506 = vmatpush1.msra.mxu0 %v223
    %507 = vmatprep.subr.mxu0 0.0
    %508 = vmatpush1.msra.mxu0 %v222
    %509 = vmatprep.subr.mxu0 0.0
    %510 = vmatpush1.msra.mxu0 %v221
    %511 = vmatprep.subr.mxu0 0.0
    %512 = vmatpush2.msra.mxu0 0.0
    %513 = vmatprep.subr.mxu0 0.0
    %514 = vmatpush2.msra.mxu0 0.0
    %515 = vmatprep.subr.mxu0 0.0
    %516 = vmatpush2.msra.mxu0 0.0
    %517 = vmatprep.subr.mxu0 0.0
    %518 = vmatpush2.msra.mxu0 0.0
    %519 = vmatprep.subr.mxu0 0.0
    %520 = vmatpush2.msra.mxu0 0.0
    %521 = vmatprep.subr.mxu0 0.0
    %522 = vmatpush2.msra.mxu0 0.0
    %523 = vmatprep.subr.mxu0 0.0
    %524 = vmatpush2.msra.mxu0 0.0
    %525 = vmatprep.subr.mxu0 0.0
    %526 = vmatpush2.msra.mxu0 0.0
    %527 = vmatprep.subr.mxu0 0.0
    %528 = vmatpush2.msra.mxu0 0.0
    %529 = vmatprep.subr.mxu0 0.0
    %530 = vmatpush2.msra.mxu0 0.0
    %531 = vmatprep.subr.mxu0 0.0
    %532 = vmatpush2.msra.mxu0 0.0
    %533 = vmatprep.subr.mxu0 0.0
    %534 = vmatpush2.msra.mxu0 0.0
    %535 = vmatprep.subr.mxu0 0.0
    %536 = vmatpush2.msra.mxu0 0.0
    %537 = vmatprep.subr.mxu0 0.0
    %538 = vmatpush2.msra.mxu0 0.0
    %539 = vmatprep.subr.mxu0 0.0
    %540 = vmatpush2.msra.mxu0 0.0
    %541 = vmatprep.subr.mxu0 0.0
    %542 = vmatpush2.msra.mxu0 0.0
    %543 = vmatprep.mubr.f32.mxu0 0.0
    %544 = vmatmul.mubr.f32.gmra.mxu0 %v471
    %v545 = vpop.f32.mrf.mxu0
    %v546 = vadd.f32 0.0, %v545
    %v547 = vpop.f32.mrf.mxu0
    %548 = vmatprep.mubr.f32.mxu0 0.0
    %549 = vmatmul.mubr.f32.gmra.mxu0 %v472
    %v550 = vpop.f32.mrf.mxu0
    %v551 = vadd.f32 0.0, %v550
    %v552 = vpop.f32.mrf.mxu0
    %553 = vmatprep.mubr.f32.mxu0 0.0
    %554 = vmatmul.mubr.f32.gmra.mxu0 %v473
    %v555 = vpop.f32.mrf.mxu0
    %v556 = vadd.f32 0.0, %v555
    %v557 = vpop.f32.mrf.mxu0
    %558 = vmatprep.mubr.f32.mxu0 0.0
    %559 = vmatmul.mubr.f32.gmra.mxu0 %v474
    %v560 = vpop.f32.mrf.mxu0
    %v561 = vadd.f32 0.0, %v560
    %v562 = vpop.f32.mrf.mxu0
    %563 = vmatprep.mubr.f32.mxu0 0.0
    %564 = vmatmul.mubr.f32.gmra.mxu0 %v475
    %v565 = vpop.f32.mrf.mxu0
    %v566 = vadd.f32 0.0, %v565
    %v567 = vpop.f32.mrf.mxu0
    %568 = vmatprep.mubr.f32.mxu0 0.0
    %569 = vmatmul.mubr.f32.gmra.mxu0 %v476
    %v570 = vpop.f32.mrf.mxu0
    %v571 = vadd.f32 0.0, %v570
    %v572 = vpop.f32.mrf.mxu0
    %573 = vmatprep.mubr.f32.mxu0 0.0
    %574 = vmatmul.mubr.f32.gmra.mxu0 %v477
    %v575 = vpop.f32.mrf.mxu0
    %v576 = vadd.f32 0.0, %v575
    %v577 = vpop.f32.mrf.mxu0
    %578 = vmatprep.mubr.f32.mxu0 0.0
    %579 = vmatmul.mubr.f32.gmra.mxu0 %v478
    %v580 = vpop.f32.mrf.mxu0
    %v581 = vadd.f32 0.0, %v580
    %v582 = vpop.f32.mrf.mxu0
    %583 = vdwg.mxu0
    %v584 = vmax.f32 %v546, 0.0
    %v585 = vmax.f32 %v551, 0.0
    %v586 = vmax.f32 %v556, 0.0
    %v587 = vmax.f32 %v561, 0.0
    %v588 = vmax.f32 %v566, 0.0
    %v589 = vmax.f32 %v571, 0.0
    %v590 = vmax.f32 %v576, 0.0
    %v591 = vmax.f32 %v581, 0.0
    %v592 = vadd.f32 %v584, 1e-05
    %v593 = vadd.f32 %v585, 1e-05
    %v594 = vadd.f32 %v586, 1e-05
    %v595 = vadd.f32 %v587, 1e-05
    %v596 = vadd.f32 %v588, 1e-05
    %v597 = vadd.f32 %v589, 1e-05
    %v598 = vadd.f32 %v590, 1e-05
    %v599 = vadd.f32 %v591, 1e-05
    %v600 = vrsqrt.pop %v592
    %v601 = vrsqrt.pop %v593
    %v602 = vrsqrt.pop %v594
    %v603 = vrsqrt.pop %v595
    %v604 = vrsqrt.pop %v596
    %v605 = vrsqrt.pop %v597
    %v606 = vrsqrt.pop %v598
    %v607 = vrsqrt.pop %v599
    %v608 = vld [vmem:[#allocation10] sm:$0xff]
    %v609 = vld [vmem:[#allocation10 + $0x8] sm:$0xff]
    %v610 = vld [vmem:[#allocation10 + $0x10] sm:$0xff]
    %v611 = vld [vmem:[#allocation10 + $0x18] sm:$0xff]
    %v612 = vld [vmem:[#allocation10 + $0x20] sm:$0xff]
    %v613 = vld [vmem:[#allocation10 + $0x28] sm:$0xff]
    %v614 = vld [vmem:[#allocation10 + $0x30] sm:$0xff]
    %v615 = vld [vmem:[#allocation10 + $0x38] sm:$0xff]
    %v616 = vld [vmem:[#allocation10 + $0x40] sm:$0xff]
    %v617 = vld [vmem:[#allocation10 + $0x48] sm:$0xff]
    %v618 = vld [vmem:[#allocation10 + $0x50] sm:$0xff]
    %v619 = vld [vmem:[#allocation10 + $0x58] sm:$0xff]
    %v620 = vld [vmem:[#allocation10 + $0x60] sm:$0xff]
    %v621 = vld [vmem:[#allocation10 + $0x68] sm:$0xff]
    %v622 = vld [vmem:[#allocation10 + $0x70] sm:$0xff]
    %v623 = vld [vmem:[#allocation10 + $0x78] sm:$0xff]
    %624 = vmatprep.subr.mxu0 0.0
    %625 = vmatpush1.msra.mxu0 %v623
    %626 = vmatprep.subr.mxu0 0.0
    %627 = vmatpush1.msra.mxu0 %v622
    %628 = vmatprep.subr.mxu0 0.0
    %629 = vmatpush1.msra.mxu0 %v621
    %630 = vmatprep.subr.mxu0 0.0
    %631 = vmatpush1.msra.mxu0 %v620
    %632 = vmatprep.subr.mxu0 0.0
    %633 = vmatpush1.msra.mxu0 %v619
    %634 = vmatprep.subr.mxu0 0.0
    %635 = vmatpush1.msra.mxu0 %v618
    %636 = vmatprep.subr.mxu0 0.0
    %637 = vmatpush1.msra.mxu0 %v617
    %638 = vmatprep.subr.mxu0 0.0
    %639 = vmatpush1.msra.mxu0 %v616
    %640 = vmatprep.subr.mxu0 0.0
    %641 = vmatpush1.msra.mxu0 %v615
    %642 = vmatprep.subr.mxu0 0.0
    %643 = vmatpush1.msra.mxu0 %v614
    %644 = vmatprep.subr.mxu0 0.0
    %645 = vmatpush1.msra.mxu0 %v613
    %646 = vmatprep.subr.mxu0 0.0
    %647 = vmatpush1.msra.mxu0 %v612
    %648 = vmatprep.subr.mxu0 0.0
    %649 = vmatpush1.msra.mxu0 %v611
    %650 = vmatprep.subr.mxu0 0.0
    %651 = vmatpush1.msra.mxu0 %v610
    %652 = vmatprep.subr.mxu0 0.0
    %653 = vmatpush1.msra.mxu0 %v609
    %654 = vmatprep.subr.mxu0 0.0
    %655 = vmatpush1.msra.mxu0 %v608
    %656 = vmatprep.subr.mxu0 0.0
    %657 = vmatpush2.msra.mxu0 0.0
    %658 = vmatprep.subr.mxu0 0.0
    %659 = vmatpush2.msra.mxu0 0.0
    %660 = vmatprep.subr.mxu0 0.0
    %661 = vmatpush2.msra.mxu0 0.0
    %662 = vmatprep.subr.mxu0 0.0
    %663 = vmatpush2.msra.mxu0 0.0
    %664 = vmatprep.subr.mxu0 0.0
    %665 = vmatpush2.msra.mxu0 0.0
    %666 = vmatprep.subr.mxu0 0.0
    %667 = vmatpush2.msra.mxu0 0.0
    %668 = vmatprep.subr.mxu0 0.0
    %669 = vmatpush2.msra.mxu0 0.0
    %670 = vmatprep.subr.mxu0 0.0
    %671 = vmatpush2.msra.mxu0 0.0
    %672 = vmatprep.subr.mxu0 0.0
    %673 = vmatpush2.msra.mxu0 0.0
    %674 = vmatprep.subr.mxu0 0.0
    %675 = vmatpush2.msra.mxu0 0.0
    %676 = vmatprep.subr.mxu0 0.0
    %677 = vmatpush2.msra.mxu0 0.0
    %678 = vmatprep.subr.mxu0 0.0
    %679 = vmatpush2.msra.mxu0 0.0
    %680 = vmatprep.subr.mxu0 0.0
    %681 = vmatpush2.msra.mxu0 0.0
    %682 = vmatprep.subr.mxu0 0.0
    %683 = vmatpush2.msra.mxu0 0.0
    %684 = vmatprep.subr.mxu0 0.0
    %685 = vmatpush2.msra.mxu0 0.0
    %686 = vmatprep.subr.mxu0 0.0
    %687 = vmatpush2.msra.mxu0 0.0
    %688 = vmatprep.mubr.f32.mxu0 0.0
    %689 = vmatmul.mubr.f32.gmra.mxu0 %v600
    %v690 = vpop.f32.mrf.mxu0
    %v691 = vadd.f32 0.0, %v690
    %v692 = vpop.f32.mrf.mxu0
    %693 = vmatprep.mubr.f32.mxu0 0.0
    %694 = vmatmul.mubr.f32.gmra.mxu0 %v601
    %v695 = vpop.f32.mrf.mxu0
    %v696 = vadd.f32 0.0, %v695
    %v697 = vpop.f32.mrf.mxu0
    %698 = vmatprep.mubr.f32.mxu0 0.0
    %699 = vmatmul.mubr.f32.gmra.mxu0 %v602
    %v700 = vpop.f32.mrf.mxu0
    %v701 = vadd.f32 0.0, %v700
    %v702 = vpop.f32.mrf.mxu0
    %703 = vmatprep.mubr.f32.mxu0 0.0
    %704 = vmatmul.mubr.f32.gmra.mxu0 %v603
    %v705 = vpop.f32.mrf.mxu0
    %v706 = vadd.f32 0.0, %v705
    %v707 = vpop.f32.mrf.mxu0
    %708 = vmatprep.mubr.f32.mxu0 0.0
    %709 = vmatmul.mubr.f32.gmra.mxu0 %v604
    %v710 = vpop.f32.mrf.mxu0
    %v711 = vadd.f32 0.0, %v710
    %v712 = vpop.f32.mrf.mxu0
    %713 = vmatprep.mubr.f32.mxu0 0.0
    %714 = vmatmul.mubr.f32.gmra.mxu0 %v605
    %v715 = vpop.f32.mrf.mxu0
    %v716 = vadd.f32 0.0, %v715
    %v717 = vpop.f32.mrf.mxu0
    %718 = vmatprep.mubr.f32.mxu0 0.0
    %719 = vmatmul.mubr.f32.gmra.mxu0 %v606
    %v720 = vpop.f32.mrf.mxu0
    %v721 = vadd.f32 0.0, %v720
    %v722 = vpop.f32.mrf.mxu0
    %723 = vmatprep.mubr.f32.mxu0 0.0
    %724 = vmatmul.mubr.f32.gmra.mxu0 %v607
    %v725 = vpop.f32.mrf.mxu0
    %v726 = vadd.f32 0.0, %v725
    %v727 = vpop.f32.mrf.mxu0
    %728 = vdwg.mxu0
    %v729 = vmul.f32 %v463, %v691
    %v730 = vmul.f32 %v464, %v696
    %v731 = vmul.f32 %v465, %v701
    %v732 = vmul.f32 %v466, %v706
    %v733 = vmul.f32 %v467, %v711
    %v734 = vmul.f32 %v468, %v716
    %v735 = vmul.f32 %v469, %v721
    %v736 = vmul.f32 %v470, %v726
    %v737 = vld [vmem:[%s2] sm:$0x1]
    %v739 = vlaneseq
    %v740 = vshrl.u32 %v739, 7
    %v741 = vsub.s32 0, %v740
    %v742 = vrot.slane %v737, %v741
    %v744 = vadd.f32 %v729, %v742
    %v745 = vadd.f32 %v730, %v742
    %v746 = vadd.f32 %v731, %v742
    %v747 = vadd.f32 %v732, %v742
    %v748 = vadd.f32 %v733, %v742
    %v749 = vadd.f32 %v734, %v742
    %v750 = vadd.f32 %v735, %v742
    %v751 = vadd.f32 %v736, %v742
    %v752 = vmax.f32 %v744, 0.0
    %v753 = vmax.f32 %v745, 0.0
    %v754 = vmax.f32 %v746, 0.0
    %v755 = vmax.f32 %v747, 0.0
    %v756 = vmax.f32 %v748, 0.0
    %v757 = vmax.f32 %v749, 0.0
    %v758 = vmax.f32 %v750, 0.0
    %v759 = vmax.f32 %v751, 0.0
    %760 = vst [vmem:[#allocation11] sm:$0xff] %v752
    %761 = vst [vmem:[#allocation11 + $0x8] sm:$0xff] %v753
    %762 = vst [vmem:[#allocation11 + $0x10] sm:$0xff] %v754
    %763 = vst [vmem:[#allocation11 + $0x18] sm:$0xff] %v755
    %764 = vst [vmem:[#allocation11 + $0x20] sm:$0xff] %v756
    %765 = vst [vmem:[#allocation11 + $0x28] sm:$0xff] %v757
    %766 = vst [vmem:[#allocation11 + $0x30] sm:$0xff] %v758
    %767 = vst [vmem:[#allocation11 + $0x38] sm:$0xff] %v759
    // Predicated region
    $region46: #{tpu_custom_call.1} parent=1 // pred_check
      _
    $region47: #{tpu_custom_call.1} parent=1 // pred_check_branch
      %769 = sbr.rel (0) target = $region49
    $region48: #{tpu_custom_call.1} parent=1 // pred_region
      %s771 = ssub.s32 1024, 1024
      %772 = vsyncadd [#allocation4], %s771
      %s773 = sshll.u32 [#allocation11], 4
      %s774 = int_to_ptr.vmem [resolvable:$true] %s773
      %779 = dma.vmem_to_hbm [thread:$0]  %s774, 1024, %s6, [#allocation4], 128, 128, 8
    $region49: #{tpu_custom_call.1} parent=1 // pred_fallthru
      _
    // Predicated region
    $region50: #{tpu_custom_call.1} parent=1 // pred_check
      _
    $region51: #{tpu_custom_call.1} parent=1 // pred_check_branch
      %781 = sbr.rel (0) target = $region53
    $region52: #{tpu_custom_call.1} parent=1 // pred_region
      %782 = dma.done [#allocation4], 1024
    $region53: #{tpu_custom_call.1} parent=1 // pred_fallthru
      _
    %783 = vsyncpa [#allocation3], 1
    %784 = vsyncpa [#allocation6], 1
    %785 = vsyncpa [#allocation9], 1
    %786 = vsyncpa [#allocation4], 1

</llo_original>
